<compile_context>
chip_gen: v6e
topology: v6e:2x2x1
jax: 0.10.0
libtpu: 0.0.40
codegen_flags: <defaults>
</compile_context>

<pallas_src>
import jax
import jax.numpy as jnp
from jax.experimental import pallas as pl
from jax.experimental.pallas import tpu as pltpu

NEG_SLOPE = 0.01  # F.leaky_relu default


def _leaky_relu(v):
    return jnp.where(v > 0, v, NEG_SLOPE * v)


def _round_up(v, m):
    return (v + m - 1) // m * m


def _pad_to(arr, shape):
    pads = [(0, t - s) for s, t in zip(arr.shape, shape)]
    return jnp.pad(arr, pads)


def _vmem_limit_bytes():
    """~3/4 of physical VMEM: 96 MiB on v5e/v6e (128 MiB), 48 MiB on v7x (64 MiB)."""
    try:
        cap = pltpu.get_tpu_info().vmem_capacity_bytes
    except Exception:
        cap = 128 * 1024 * 1024
    return int(cap * 3 // 4)


# --------------------------------- kernels -----------------------------------

def gcn_layer_kernel(a_ref, h_ref, w_ref, b_ref, o_ref):
    """One GCN layer on a row-tile of nodes: leaky_relu(A_tile @ H @ W + b).

    a_ref: [TM, Np]    bf16 row-tile of the normalized adjacency
    h_ref: [Np, Fin]   bf16 full node-feature matrix (grid-constant block)
    w_ref: [Fin, Fout] bf16 weights (grid-constant)
    b_ref: [1, Fout]   f32 bias (grid-constant)
    o_ref: [TM, Fout]  bf16 output row-tile
    """
    ah = jnp.dot(a_ref[...], h_ref[...], preferred_element_type=jnp.float32)
    z = jnp.dot(ah.astype(jnp.bfloat16), w_ref[...],
                preferred_element_type=jnp.float32) + b_ref[...]
    o_ref[...] = _leaky_relu(z).astype(o_ref.dtype)


def gcn_fc_pool_kernel(a_ref, h_ref, w2_ref, b2_ref, w3_ref, b3_ref, p_ref, o_ref):
    """Fused conv2 + fc_output + global_mean_pool, accumulated over node tiles.

    a_ref:  [TM, Np]      bf16 row-tile of the normalized adjacency
    h_ref:  [Np, H1]      bf16 full h1 (grid-constant)
    w2_ref: [H1, H2]      bf16, b2_ref: [1, H2] f32   (grid-constant)
    w3_ref: [H2, OUTp]    bf16, b3_ref: [1, OUTp] f32 (grid-constant)
    p_ref:  [Gp, TM]      bf16 mean-pool columns for this node tile
    o_ref:  [Gp, OUTp]    f32 output, resident across the grid axis (accumulator)
    """
    @pl.when(pl.program_id(0) == 0)
    def _():
        o_ref[...] = jnp.zeros_like(o_ref)

    ah = jnp.dot(a_ref[...], h_ref[...], preferred_element_type=jnp.float32)
    z2 = jnp.dot(ah.astype(jnp.bfloat16), w2_ref[...],
                 preferred_element_type=jnp.float32) + b2_ref[...]
    h2 = _leaky_relu(z2).astype(jnp.bfloat16)
    z3 = jnp.dot(h2, w3_ref[...], preferred_element_type=jnp.float32) + b3_ref[...]
    h3 = _leaky_relu(z3).astype(jnp.bfloat16)
    # Plain [Gp, TM] @ [TM, OUTp] matmul (no trans_a contraction).
    o_ref[...] += jnp.dot(p_ref[...], h3, preferred_element_type=jnp.float32)


# ------------------------------- pallas wrappers ------------------------------

def _gcn_layer(a_bf, h_bf, w_bf, b_f32, *, tm, vmem_limit):
    n_pad = a_bf.shape[0]
    f_in = h_bf.shape[1]
    f_out = w_bf.shape[1]
    grid = (n_pad // tm,)
    cost = pl.CostEstimate(
        flops=2 * n_pad * n_pad * f_in + 2 * n_pad * f_in * f_out,
        transcendentals=0,
        bytes_accessed=int((a_bf.size + h_bf.size + w_bf.size) * 2
                           + b_f32.size * 4 + n_pad * f_out * 2))
    const = pl.Buffered(1)  # grid-constant blocks: single-buffer, save VMEM
    return pl.pallas_call(
        gcn_layer_kernel,
        out_shape=jax.ShapeDtypeStruct((n_pad, f_out), jnp.bfloat16),
        grid=grid,
        in_specs=[
            pl.BlockSpec((tm, n_pad), lambda i: (i, 0)),                       # A row-tile
            pl.BlockSpec((n_pad, f_in), lambda i: (0, 0), pipeline_mode=const),
            pl.BlockSpec((f_in, f_out), lambda i: (0, 0), pipeline_mode=const),
            pl.BlockSpec((1, f_out), lambda i: (0, 0), pipeline_mode=const),
        ],
        out_specs=pl.BlockSpec((tm, f_out), lambda i: (i, 0)),
        compiler_params=pltpu.CompilerParams(
            dimension_semantics=("parallel",),      # megacore sharding on v7x
            vmem_limit_bytes=vmem_limit),
        cost_estimate=cost,
    )(a_bf, h_bf, w_bf, b_f32)


def _gcn_fc_pool(a_bf, h_bf, w2_bf, b2_f32, w3_bf, b3_f32, pool_bf, *, tm, vmem_limit):
    n_pad = a_bf.shape[0]
    h1 = h_bf.shape[1]
    h2 = w2_bf.shape[1]
    out_p = w3_bf.shape[1]
    g_p = pool_bf.shape[0]
    grid = (n_pad // tm,)
    cost = pl.CostEstimate(
        flops=(2 * n_pad * n_pad * h1 + 2 * n_pad * h1 * h2
               + 2 * n_pad * h2 * out_p + 2 * g_p * n_pad * out_p),
        transcendentals=0,
        bytes_accessed=int((a_bf.size + h_bf.size + w2_bf.size + w3_bf.size
                            + pool_bf.size) * 2
                           + (b2_f32.size + b3_f32.size) * 4
                           + g_p * out_p * 4))
    const = pl.Buffered(1)
    return pl.pallas_call(
        gcn_fc_pool_kernel,
        out_shape=jax.ShapeDtypeStruct((g_p, out_p), jnp.float32),
        grid=grid,
        in_specs=[
            pl.BlockSpec((tm, n_pad), lambda i: (i, 0)),                       # A row-tile
            pl.BlockSpec((n_pad, h1), lambda i: (0, 0), pipeline_mode=const),  # h1 (const)
            pl.BlockSpec((h1, h2), lambda i: (0, 0), pipeline_mode=const),     # W2
            pl.BlockSpec((1, h2), lambda i: (0, 0), pipeline_mode=const),      # b2
            pl.BlockSpec((h2, out_p), lambda i: (0, 0), pipeline_mode=const),  # W3
            pl.BlockSpec((1, out_p), lambda i: (0, 0), pipeline_mode=const),   # b3
            pl.BlockSpec((g_p, tm), lambda i: (0, i)),                         # pool cols
        ],
        out_specs=pl.BlockSpec((g_p, out_p), lambda i: (0, 0)),
        compiler_params=pltpu.CompilerParams(
            dimension_semantics=("arbitrary",),     # accumulation over node tiles
            vmem_limit_bytes=vmem_limit),
        cost_estimate=cost,
    )(a_bf, h_bf, w2_bf, b2_f32, w3_bf, b3_f32, pool_bf)


def lite_cen_gnn_encoder(a_norm, x, w1, b1, w2, b2, w3, b3, pool):
    """Full forward pass. Returns [G, OUT] float32."""
    N, f_in = x.shape
    G = pool.shape[0]
    H1, H2, OUT = w1.shape[1], w2.shape[1], w3.shape[1]

    # Tile selection: lane-align the node axis to 128; small-graph fast path
    # runs a single grid step per layer (tm = n_pad); otherwise tm = 256 with
    # n_pad an even multiple of tm so the v7x megacore split is balanced.
    n_pad = _round_up(N, 128)
    if n_pad <= 512:
        tm = n_pad
    else:
        tm = 256
        n_pad = _round_up(N, 2 * tm)

    f_in_p = _round_up(f_in, 128)
    h1_p = _round_up(H1, 128)
    h2_p = _round_up(H2, 128)
    out_p = _round_up(OUT, 128)
    g_p = _round_up(G, 8)

    bf = jnp.bfloat16
    a_bf = _pad_to(a_norm, (n_pad, n_pad)).astype(bf)
    x_bf = _pad_to(x, (n_pad, f_in_p)).astype(bf)
    w1_bf = _pad_to(w1, (f_in_p, h1_p)).astype(bf)
    w2_bf = _pad_to(w2, (h1_p, h2_p)).astype(bf)
    w3_bf = _pad_to(w3, (h2_p, out_p)).astype(bf)
    b1_f = _pad_to(b1.reshape(1, -1), (1, h1_p)).astype(jnp.float32)
    b2_f = _pad_to(b2.reshape(1, -1), (1, h2_p)).astype(jnp.float32)
    b3_f = _pad_to(b3.reshape(1, -1), (1, out_p)).astype(jnp.float32)
    pool_bf = _pad_to(pool, (g_p, n_pad)).astype(bf)          # [g_p, n_pad]

    vmem_limit = _vmem_limit_bytes()
    h1_act = _gcn_layer(a_bf, x_bf, w1_bf, b1_f, tm=tm, vmem_limit=vmem_limit)
    y = _gcn_fc_pool(a_bf, h1_act, w2_bf, b2_f, w3_bf, b3_f, pool_bf,
                     tm=tm, vmem_limit=vmem_limit)
    return y[:G, :OUT]


# ------------------------------ glue (plain JAX) ------------------------------

def build_gcn_norm_adjacency(edge_index, num_nodes):
    """Dense D^{-1/2} (A + I) D^{-1/2}, PyG gcn_norm convention (src -> dst)."""
    src, dst = edge_index[0], edge_index[1]
    a = jnp.zeros((num_nodes, num_nodes), jnp.float32)
    a = a.at[dst, src].add(1.0)                        # message flows src -> dst
    a_hat = a + jnp.eye(num_nodes, dtype=jnp.float32)  # add self loops
    deg = jnp.sum(a_hat, axis=1)
    dinv = jnp.where(deg > 0, 1.0 / jnp.sqrt(deg), 0.0)
    return dinv[:, None] * a_hat * dinv[None, :]


def build_mean_pool_matrix(batch, num_graphs):
    """P[g, n] = 1/|V_g| if node n belongs to graph g else 0."""
    onehot = (batch[None, :] == jnp.arange(num_graphs)[:, None]).astype(jnp.float32)
    counts = jnp.maximum(jnp.sum(onehot, axis=1, keepdims=True), 1.0)
    return onehot / counts


# ---------------------------------- main --------------------------------------

if __name__ == "__main__":
    # Small shapes consistent with the module's forward (full-size module uses
    # GCNConv(512,1024), GCNConv(1024,1024), Linear(1024, hidden)).
    G = 2                              # number of graphs in the batch
    NODES_PER_GRAPH = 16
    N = G * NODES_PER_GRAPH            # 32 nodes
    NODE_DIM = 32                      # data_graph.x feature dim
    ACT_DIM = 32                       # action feature dim
    F_IN = NODE_DIM + ACT_DIM          # 64  (analog of 512)
    H1 = 128                           # analog of 1024
    H2 = 128                           # analog of 1024 (conv2 out == fc in)
    HIDDEN = 32                        # hidden_feature_dim

    key = jax.random.PRNGKey(0)
    k = jax.random.split(key, 8)

    node_x = jax.random.normal(k[0], (N, NODE_DIM), jnp.float32)
    action = jax.random.normal(k[1], (N, ACT_DIM), jnp.float32)
    x = jnp.concatenate([node_x, action], axis=1)      # torch.concat(..., dim=1)

    # Deterministic parameter init (synthetic, not a checkpoint).
    w1 = jax.random.normal(k[2], (F_IN, H1), jnp.float32) * (1.0 / jnp.sqrt(F_IN))
    b1 = jnp.zeros((1, H1), jnp.float32)
    w2 = jax.random.normal(k[3], (H1, H2), jnp.float32) * (1.0 / jnp.sqrt(H1))
    b2 = jnp.zeros((1, H2), jnp.float32)
    w3 = jax.random.normal(k[4], (H2, HIDDEN), jnp.float32) * (1.0 / jnp.sqrt(H2))
    b3 = jax.random.normal(k[5], (1, HIDDEN), jnp.float32) * 0.01

    # Deterministic edge_index: bidirectional ring inside each sub-graph.
    srcs, dsts = [], []
    for g in range(G):
        base = g * NODES_PER_GRAPH
        for i in range(NODES_PER_GRAPH):
            j = (i + 1) % NODES_PER_GRAPH
            srcs += [base + i, base + j]
            dsts += [base + j, base + i]
    edge_index = jnp.array([srcs, dsts], dtype=jnp.int32)
    batch = jnp.repeat(jnp.arange(G, dtype=jnp.int32), NODES_PER_GRAPH)

    a_norm = build_gcn_norm_adjacency(edge_index, N)
    pool = build_mean_pool_matrix(batch, G)

    out = lite_cen_gnn_encoder(a_norm, x, w1, b1, w2, b2, w3, b3, pool)
    out = jax.block_until_ready(out)

    # Reference mirroring the kernel's bf16-operand / f32-accumulate cast points.
    def ref_forward():
        bf = jnp.bfloat16
        a_b, x_b = a_norm.astype(bf), x.astype(bf)

        def gcn(ab, hb, wb, b):
            ah = jnp.dot(ab, hb, preferred_element_type=jnp.float32)
            z = jnp.dot(ah.astype(bf), wb, preferred_element_type=jnp.float32) + b
            return _leaky_relu(z).astype(bf)

        h1 = gcn(a_b, x_b, w1.astype(bf), b1)
        h2 = gcn(a_b, h1, w2.astype(bf), b2)
        z3 = jnp.dot(h2, w3.astype(bf), preferred_element_type=jnp.float32) + b3
        h3 = _leaky_relu(z3).astype(bf)
        return jnp.dot(pool.astype(bf), h3, preferred_element_type=jnp.float32)

    ref = ref_forward()
    assert out.shape == (G, HIDDEN)
    assert jnp.allclose(out, ref, atol=2e-3, rtol=2e-3), "mismatch vs reference"

    print("KERNEL_OK")
</pallas_src>

<mosaic_0001>
module attributes {stable_mosaic.version = 11 : i64} {
  func.func @gcn_layer_kernel(%arg0: i32, %arg1: memref<128x128xbf16, #tpu.memory_space<vmem>>, %arg2: memref<128x128xbf16, #tpu.memory_space<vmem>>, %arg3: memref<128x128xbf16, #tpu.memory_space<vmem>>, %arg4: memref<1x128xf32, #tpu.memory_space<vmem>>, %arg5: memref<128x128xbf16, #tpu.memory_space<vmem>>) attributes {dimension_semantics = [#tpu.dimension_semantics<parallel>], iteration_bounds = array<i64: 1>, scalar_prefetch = 0 : i64, scratch_operands = 0 : i64, tpu.core_type = #tpu.core_type<tc>, window_params = [{transform_indices = @transform_0, window_bounds = array<i64: 128, 128>}, {pipeline_mode = #tpu.pipeline_mode<synchronous>, transform_indices = @transform_1, window_bounds = array<i64: 128, 128>}, {pipeline_mode = #tpu.pipeline_mode<synchronous>, transform_indices = @transform_2, window_bounds = array<i64: 128, 128>}, {pipeline_mode = #tpu.pipeline_mode<synchronous>, transform_indices = @transform_3, window_bounds = array<i64: 1, 128>}, {transform_indices = @transform_4, window_bounds = array<i64: 128, 128>}]} {
    %c0 = arith.constant 0 : index
    %c0_0 = arith.constant 0 : index
    %0 = vector.load %arg1[%c0, %c0_0] : memref<128x128xbf16, #tpu.memory_space<vmem>>, vector<128x128xbf16>
    %c0_1 = arith.constant 0 : index
    %c0_2 = arith.constant 0 : index
    %1 = vector.load %arg2[%c0_1, %c0_2] : memref<128x128xbf16, #tpu.memory_space<vmem>>, vector<128x128xbf16>
    %cst = arith.constant dense<0.000000e+00> : vector<128x128xf32>
    %2 = tpu.matmul %0, %1, %cst {dimension_numbers = #tpu.dot_dimension_numbers<[1], [0], [0], [1], [0, 0, 1, 1], [], []>} : vector<128x128xbf16>, vector<128x128xbf16>, vector<128x128xf32> -> vector<128x128xf32>
    %3 = arith.truncf %2 : vector<128x128xf32> to vector<128x128xbf16>
    %c0_3 = arith.constant 0 : index
    %c0_4 = arith.constant 0 : index
    %4 = vector.load %arg3[%c0_3, %c0_4] : memref<128x128xbf16, #tpu.memory_space<vmem>>, vector<128x128xbf16>
    %cst_5 = arith.constant dense<0.000000e+00> : vector<128x128xf32>
    %5 = tpu.matmul %3, %4, %cst_5 {dimension_numbers = #tpu.dot_dimension_numbers<[1], [0], [0], [1], [0, 0, 1, 1], [], []>} : vector<128x128xbf16>, vector<128x128xbf16>, vector<128x128xf32> -> vector<128x128xf32>
    %c0_6 = arith.constant 0 : index
    %c0_7 = arith.constant 0 : index
    %6 = vector.load %arg4[%c0_6, %c0_7] : memref<1x128xf32, #tpu.memory_space<vmem>>, vector<1x128xf32>
    %7 = vector.broadcast %6 : vector<1x128xf32> to vector<128x128xf32>
    %8 = arith.addf %5, %7 : vector<128x128xf32>
    %cst_8 = arith.constant 0.000000e+00 : f32
    %9 = vector.broadcast %cst_8 : f32 to vector<128x128xf32>
    %10 = arith.cmpf ogt, %8, %9 : vector<128x128xf32>
    %cst_9 = arith.constant 0.00999999977 : f32
    %11 = vector.broadcast %cst_9 : f32 to vector<128x128xf32>
    %12 = arith.mulf %11, %8 : vector<128x128xf32>
    %13 = arith.select %10, %8, %12 : vector<128x128xi1>, vector<128x128xf32>
    %14 = arith.truncf %13 : vector<128x128xf32> to vector<128x128xbf16>
    %c0_10 = arith.constant 0 : index
    %c0_11 = arith.constant 0 : index
    %15 = vector.load %arg5[%c0_10, %c0_11] : memref<128x128xbf16, #tpu.memory_space<vmem>>, vector<128x128xbf16>
    tpu.vector_store %arg5[%c0_10, %c0_11], %14 {strides = array<i32>} : memref<128x128xbf16, #tpu.memory_space<vmem>>, vector<128x128xbf16>,
    return
  }
  func.func @transform_0(%arg0: i32) -> (i32, i32) {
    %c0_i32 = arith.constant 0 : i32
    %c0_i32_0 = arith.constant 0 : i32
    return %arg0, %c0_i32 : i32, i32
  }
  func.func @transform_1(%arg0: i32) -> (i32, i32) {
    %c0_i32 = arith.constant 0 : i32
    %c0_i32_0 = arith.constant 0 : i32
    %c0_i32_1 = arith.constant 0 : i32
    return %c0_i32, %c0_i32_0 : i32, i32
  }
  func.func @transform_2(%arg0: i32) -> (i32, i32) {
    %c0_i32 = arith.constant 0 : i32
    %c0_i32_0 = arith.constant 0 : i32
    %c0_i32_1 = arith.constant 0 : i32
    return %c0_i32, %c0_i32_0 : i32, i32
  }
  func.func @transform_3(%arg0: i32) -> (i32, i32) {
    %c0_i32 = arith.constant 0 : i32
    %c0_i32_0 = arith.constant 0 : i32
    %c0_i32_1 = arith.constant 0 : i32
    return %c0_i32, %c0_i32_0 : i32, i32
  }
  func.func @transform_4(%arg0: i32) -> (i32, i32) {
    %c0_i32 = arith.constant 0 : i32
    %c0_i32_0 = arith.constant 0 : i32
    return %arg0, %c0_i32 : i32, i32
  }
}

</mosaic_0001>

<llo_original>
// kernel: tpu_custom_call.1
$region0: #{tpu_custom_call.1}
  #allocation0 [shape = 'u32[]', space=smem, size = 0x4, offset = 0x4, fixed_abs, tag = 'smem constant byte address 0x4 - core index']
  #allocation1 [shape = 'u32[144,128]{1,0:T(1,128)}', space=vmem, size = 0x12000, scoped, tag = 'internal scratch']
  %s0 = inlined_call_operand.hbm [shape: bf16[128,128], index: 0, kind: input, shape index: {}]
  %s1 = inlined_call_operand.hbm [shape: bf16[128,128], index: 1, kind: input, shape index: {}]
  %s2 = inlined_call_operand.hbm [shape: bf16[128,128], index: 2, kind: input, shape index: {}]
  %s3 = inlined_call_operand.vmem [shape: f32[1,128], index: 3, kind: input, shape index: {}]
  %s4 = inlined_call_operand.hbm [shape: bf16[128,128], index: 4, kind: output, shape index: {}]
  %s5 = sld [smem:[#allocation0]]
  $region38: #{tpu_custom_call.1} parent=0
    _
  %s7 = ssub.s32 1, %s5
  %s8 = scalar_select 0, %s7, %s5
  $region1: #{tpu_custom_call.1} parent=0
    #allocation2 [shape = 'u8[32768]{0}', space=vmem, size = 0x8000, scoped, tag = 'input window, operand 0, single buffered']
    #allocation3 [shape = 's32[1]{0}', space=sflag, size = 0x4, scoped, tag = 'scoped memory for tpu_custom_call.1']
    #allocation4 [shape = 's32[1]{0}', space=sflag, size = 0x4, scoped, tag = 'scoped memory for tpu_custom_call.1']
    #allocation5 [shape = 'u8[32768]{0}', space=vmem, size = 0x8000, scoped, tag = 'input window, operand 1, single buffered']
    #allocation6 [shape = 's32[1]{0}', space=sflag, size = 0x4, scoped, tag = 'scoped memory for tpu_custom_call.1']
    #allocation7 [shape = 'u8[32768]{0}', space=vmem, size = 0x8000, scoped, tag = 'input window, operand 2, single buffered']
    #allocation8 [shape = 'u8[32768]{0}', space=vmem, size = 0x8000, scoped, tag = 'output window, operand 0, single buffered']
    %9 = vsyncpa [#allocation3], 0
    %10 = vsyncpa [#allocation6], 0
    %11 = vsyncpa [#allocation4], 0
    // Predicated region
    $region2: #{tpu_custom_call.1} parent=1 // pred_check
      _
    $region3: #{tpu_custom_call.1} parent=1 // pred_check_branch
      %13 = sbr.rel (0) target = $region5
    $region4: #{tpu_custom_call.1} parent=1 // pred_region
      %s15 = ssub.s32 1024, 1024
      %16 = vsyncadd [#allocation3], %s15
      %s17 = sshll.u32 [#allocation2], 4
      %s18 = int_to_ptr.vmem [resolvable:$true] %s17
      %23 = dma.hbm_to_vmem [thread:$0]  %s0, 1024, %s18, [#allocation3], 64, 64, 4
    $region5: #{tpu_custom_call.1} parent=1 // pred_fallthru
      _
    // Predicated region
    $region6: #{tpu_custom_call.1} parent=1 // pred_check
      _
    $region7: #{tpu_custom_call.1} parent=1 // pred_check_branch
      %25 = sbr.rel (0) target = $region9
    $region8: #{tpu_custom_call.1} parent=1 // pred_region
      %s27 = ssub.s32 1024, 1024
      %28 = vsyncadd [#allocation6], %s27
      %s29 = sshll.u32 [#allocation5], 4
      %s30 = int_to_ptr.vmem [resolvable:$true] %s29
      %35 = dma.hbm_to_vmem [thread:$0]  %s1, 1024, %s30, [#allocation6], 64, 64, 4
    $region9: #{tpu_custom_call.1} parent=1 // pred_fallthru
      _
    // Predicated region
    $region10: #{tpu_custom_call.1} parent=1 // pred_check
      _
    $region11: #{tpu_custom_call.1} parent=1 // pred_check_branch
      %37 = sbr.rel (0) target = $region13
    $region12: #{tpu_custom_call.1} parent=1 // pred_region
      %s39 = ssub.s32 1024, 1024
      %40 = vsyncadd [#allocation6], %s39
      %s41 = sshll.u32 [#allocation7], 4
      %s42 = int_to_ptr.vmem [resolvable:$true] %s41
      %47 = dma.hbm_to_vmem [thread:$0]  %s2, 1024, %s42, [#allocation6], 64, 64, 4
    $region13: #{tpu_custom_call.1} parent=1 // pred_fallthru
      _
    // Predicated region
    $region14: #{tpu_custom_call.1} parent=1 // pred_check
      _
    $region15: #{tpu_custom_call.1} parent=1 // pred_check_branch
      %49 = sbr.rel (0) target = $region17
    $region16: #{tpu_custom_call.1} parent=1 // pred_region
      _
    $region17: #{tpu_custom_call.1} parent=1 // pred_fallthru
      _
    // Predicated region
    $region18: #{tpu_custom_call.1} parent=1 // pred_check
      _
    $region19: #{tpu_custom_call.1} parent=1 // pred_check_branch
      %51 = sbr.rel (0) target = $region21
    $region20: #{tpu_custom_call.1} parent=1 // pred_region
      %52 = dma.done [#allocation3], 1024
    $region21: #{tpu_custom_call.1} parent=1 // pred_fallthru
      _
    // Predicated region
    $region22: #{tpu_custom_call.1} parent=1 // pred_check
      _
    $region23: #{tpu_custom_call.1} parent=1 // pred_check_branch
      %54 = sbr.rel (0) target = $region25
    $region24: #{tpu_custom_call.1} parent=1 // pred_region
      %55 = dma.done [#allocation6], 1024
    $region25: #{tpu_custom_call.1} parent=1 // pred_fallthru
      _
    // Predicated region
    $region26: #{tpu_custom_call.1} parent=1 // pred_check
      _
    $region27: #{tpu_custom_call.1} parent=1 // pred_check_branch
      %57 = sbr.rel (0) target = $region29
    $region28: #{tpu_custom_call.1} parent=1 // pred_region
      %58 = dma.done [#allocation6], 1024
    $region29: #{tpu_custom_call.1} parent=1 // pred_fallthru
      _
    %v60 = vld [vmem:[#allocation2] sm:$0xf]
    %v61 = vld [vmem:[#allocation2 + $0x4] sm:$0xf]
    %v62 = vld [vmem:[#allocation2 + $0x8] sm:$0xf]
    %v63 = vld [vmem:[#allocation2 + $0xc] sm:$0xf]
    %v64 = vld [vmem:[#allocation2 + $0x10] sm:$0xf]
    %v65 = vld [vmem:[#allocation2 + $0x14] sm:$0xf]
    %v66 = vld [vmem:[#allocation2 + $0x18] sm:$0xf]
    %v67 = vld [vmem:[#allocation2 + $0x1c] sm:$0xf]
    %v68 = vld [vmem:[#allocation2 + $0x20] sm:$0xf]
    %v69 = vld [vmem:[#allocation2 + $0x24] sm:$0xf]
    %v70 = vld [vmem:[#allocation2 + $0x28] sm:$0xf]
    %v71 = vld [vmem:[#allocation2 + $0x2c] sm:$0xf]
    %v72 = vld [vmem:[#allocation2 + $0x30] sm:$0xf]
    %v73 = vld [vmem:[#allocation2 + $0x34] sm:$0xf]
    %v74 = vld [vmem:[#allocation2 + $0x38] sm:$0xf]
    %v75 = vld [vmem:[#allocation2 + $0x3c] sm:$0xf]
    %v76 = vld [vmem:[#allocation5] sm:$0xf]
    %v77 = vld [vmem:[#allocation5 + $0x4] sm:$0xf]
    %v78 = vld [vmem:[#allocation5 + $0x8] sm:$0xf]
    %v79 = vld [vmem:[#allocation5 + $0xc] sm:$0xf]
    %v80 = vld [vmem:[#allocation5 + $0x10] sm:$0xf]
    %v81 = vld [vmem:[#allocation5 + $0x14] sm:$0xf]
    %v82 = vld [vmem:[#allocation5 + $0x18] sm:$0xf]
    %v83 = vld [vmem:[#allocation5 + $0x1c] sm:$0xf]
    %v84 = vld [vmem:[#allocation5 + $0x20] sm:$0xf]
    %v85 = vld [vmem:[#allocation5 + $0x24] sm:$0xf]
    %v86 = vld [vmem:[#allocation5 + $0x28] sm:$0xf]
    %v87 = vld [vmem:[#allocation5 + $0x2c] sm:$0xf]
    %v88 = vld [vmem:[#allocation5 + $0x30] sm:$0xf]
    %v89 = vld [vmem:[#allocation5 + $0x34] sm:$0xf]
    %v90 = vld [vmem:[#allocation5 + $0x38] sm:$0xf]
    %v91 = vld [vmem:[#allocation5 + $0x3c] sm:$0xf]
    %v108 = vunpack.c.l.b16 %v60
    %v109 = vunpack.c.l.b16 %v61
    %v110 = vunpack.c.l.b16 %v62
    %v111 = vunpack.c.l.b16 %v63
    %v112 = vunpack.c.l.b16 %v64
    %v113 = vunpack.c.l.b16 %v65
    %v114 = vunpack.c.l.b16 %v66
    %v115 = vunpack.c.l.b16 %v67
    %v116 = vunpack.c.l.b16 %v68
    %v117 = vunpack.c.l.b16 %v69
    %v118 = vunpack.c.l.b16 %v70
    %v119 = vunpack.c.l.b16 %v71
    %v120 = vunpack.c.l.b16 %v72
    %v121 = vunpack.c.l.b16 %v73
    %v122 = vunpack.c.l.b16 %v74
    %v123 = vunpack.c.l.b16 %v75
    %v124 = vpack.c.b16 %v109, %v108
    %v125 = vpack.c.b16 %v111, %v110
    %v126 = vpack.c.b16 %v113, %v112
    %v127 = vpack.c.b16 %v115, %v114
    %v128 = vpack.c.b16 %v117, %v116
    %v129 = vpack.c.b16 %v119, %v118
    %v130 = vpack.c.b16 %v121, %v120
    %v131 = vpack.c.b16 %v123, %v122
    %v156 = vunpack.c.l.b16 %v76
    %v157 = vunpack.c.l.b16 %v77
    %v158 = vunpack.c.l.b16 %v78
    %v159 = vunpack.c.l.b16 %v79
    %v160 = vunpack.c.l.b16 %v80
    %v161 = vunpack.c.l.b16 %v81
    %v162 = vunpack.c.l.b16 %v82
    %v163 = vunpack.c.l.b16 %v83
    %v164 = vunpack.c.l.b16 %v84
    %v165 = vunpack.c.l.b16 %v85
    %v166 = vunpack.c.l.b16 %v86
    %v167 = vunpack.c.l.b16 %v87
    %v168 = vunpack.c.l.b16 %v88
    %v169 = vunpack.c.l.b16 %v89
    %v170 = vunpack.c.l.b16 %v90
    %v171 = vunpack.c.l.b16 %v91
    %v172 = vpack.c.b16 %v157, %v156
    %v173 = vpack.c.b16 %v159, %v158
    %v174 = vpack.c.b16 %v161, %v160
    %v175 = vpack.c.b16 %v163, %v162
    %v176 = vpack.c.b16 %v165, %v164
    %v177 = vpack.c.b16 %v167, %v166
    %v178 = vpack.c.b16 %v169, %v168
    %v179 = vpack.c.b16 %v171, %v170
    %188 = vmatprep.subr.bf16.mxu0 0
    %189 = vmatpush1.bf16.msra.mxu0 %v179
    %190 = vmatprep.subr.bf16.mxu0 0
    %191 = vmatpush1.bf16.msra.mxu0 %v178
    %192 = vmatprep.subr.bf16.mxu0 0
    %193 = vmatpush1.bf16.msra.mxu0 %v177
    %194 = vmatprep.subr.bf16.mxu0 0
    %195 = vmatpush1.bf16.msra.mxu0 %v176
    %196 = vmatprep.subr.bf16.mxu0 0
    %197 = vmatpush1.bf16.msra.mxu0 %v175
    %198 = vmatprep.subr.bf16.mxu0 0
    %199 = vmatpush1.bf16.msra.mxu0 %v174
    %200 = vmatprep.subr.bf16.mxu0 0
    %201 = vmatpush1.bf16.msra.mxu0 %v173
    %202 = vmatprep.subr.bf16.mxu0 0
    %203 = vmatpush1.bf16.msra.mxu0 %v172
    %204 = vmatprep.subr.bf16.mxu0 0
    %205 = vmatpush2.bf16.msra.mxu0 0
    %206 = vmatprep.subr.bf16.mxu0 0
    %207 = vmatpush2.bf16.msra.mxu0 0
    %208 = vmatprep.subr.bf16.mxu0 0
    %209 = vmatpush2.bf16.msra.mxu0 0
    %210 = vmatprep.subr.bf16.mxu0 0
    %211 = vmatpush2.bf16.msra.mxu0 0
    %212 = vmatprep.subr.bf16.mxu0 0
    %213 = vmatpush2.bf16.msra.mxu0 0
    %214 = vmatprep.subr.bf16.mxu0 0
    %215 = vmatpush2.bf16.msra.mxu0 0
    %216 = vmatprep.subr.bf16.mxu0 0
    %217 = vmatpush2.bf16.msra.mxu0 0
    %218 = vmatprep.subr.bf16.mxu0 0
    %219 = vmatpush2.bf16.msra.mxu0 0
    %220 = vmatprep.mubr.bf16.mxu0 0
    %221 = vmatmul.mubr.bf16.gmra.mxu0 %v124
    %v222 = vpop.f32.mrf.mxu0
    %v223 = vadd.f32 0.0, %v222
    %v224 = vpop.f32.mrf.mxu0
    %v225 = vpop.f32.mrf.mxu0
    %v226 = vadd.f32 0.0, %v225
    %v227 = vpop.f32.mrf.mxu0
    %228 = vmatprep.mubr.bf16.mxu0 0
    %229 = vmatmul.mubr.bf16.gmra.mxu0 %v125
    %v230 = vpop.f32.mrf.mxu0
    %v231 = vadd.f32 0.0, %v230
    %v232 = vpop.f32.mrf.mxu0
    %v233 = vpop.f32.mrf.mxu0
    %v234 = vadd.f32 0.0, %v233
    %v235 = vpop.f32.mrf.mxu0
    %236 = vmatprep.mubr.bf16.mxu0 0
    %237 = vmatmul.mubr.bf16.gmra.mxu0 %v126
    %v238 = vpop.f32.mrf.mxu0
    %v239 = vadd.f32 0.0, %v238
    %v240 = vpop.f32.mrf.mxu0
    %v241 = vpop.f32.mrf.mxu0
    %v242 = vadd.f32 0.0, %v241
    %v243 = vpop.f32.mrf.mxu0
    %244 = vmatprep.mubr.bf16.mxu0 0
    %245 = vmatmul.mubr.bf16.gmra.mxu0 %v127
    %v246 = vpop.f32.mrf.mxu0
    %v247 = vadd.f32 0.0, %v246
    %v248 = vpop.f32.mrf.mxu0
    %v249 = vpop.f32.mrf.mxu0
    %v250 = vadd.f32 0.0, %v249
    %v251 = vpop.f32.mrf.mxu0
    %252 = vmatprep.mubr.bf16.mxu0 0
    %253 = vmatmul.mubr.bf16.gmra.mxu0 %v128
    %v254 = vpop.f32.mrf.mxu0
    %v255 = vadd.f32 0.0, %v254
    %v256 = vpop.f32.mrf.mxu0
    %v257 = vpop.f32.mrf.mxu0
    %v258 = vadd.f32 0.0, %v257
    %v259 = vpop.f32.mrf.mxu0
    %260 = vmatprep.mubr.bf16.mxu0 0
    %261 = vmatmul.mubr.bf16.gmra.mxu0 %v129
    %v262 = vpop.f32.mrf.mxu0
    %v263 = vadd.f32 0.0, %v262
    %v264 = vpop.f32.mrf.mxu0
    %v265 = vpop.f32.mrf.mxu0
    %v266 = vadd.f32 0.0, %v265
    %v267 = vpop.f32.mrf.mxu0
    %268 = vmatprep.mubr.bf16.mxu0 0
    %269 = vmatmul.mubr.bf16.gmra.mxu0 %v130
    %v270 = vpop.f32.mrf.mxu0
    %v271 = vadd.f32 0.0, %v270
    %v272 = vpop.f32.mrf.mxu0
    %v273 = vpop.f32.mrf.mxu0
    %v274 = vadd.f32 0.0, %v273
    %v275 = vpop.f32.mrf.mxu0
    %276 = vmatprep.mubr.bf16.mxu0 0
    %277 = vmatmul.mubr.bf16.gmra.mxu0 %v131
    %v278 = vpop.f32.mrf.mxu0
    %v279 = vadd.f32 0.0, %v278
    %v280 = vpop.f32.mrf.mxu0
    %v281 = vpop.f32.mrf.mxu0
    %v282 = vadd.f32 0.0, %v281
    %v283 = vpop.f32.mrf.mxu0
    %284 = vdwg.mxu0
    %v285 = vpack.c.bf16 %v226, %v223
    %v286 = vpack.c.bf16 %v234, %v231
    %v287 = vpack.c.bf16 %v242, %v239
    %v288 = vpack.c.bf16 %v250, %v247
    %v289 = vpack.c.bf16 %v258, %v255
    %v290 = vpack.c.bf16 %v266, %v263
    %v291 = vpack.c.bf16 %v274, %v271
    %v292 = vpack.c.bf16 %v282, %v279
    %v293 = vld [vmem:[#allocation7] sm:$0xf]
    %v294 = vld [vmem:[#allocation7 + $0x4] sm:$0xf]
    %v295 = vld [vmem:[#allocation7 + $0x8] sm:$0xf]
    %v296 = vld [vmem:[#allocation7 + $0xc] sm:$0xf]
    %v297 = vld [vmem:[#allocation7 + $0x10] sm:$0xf]
    %v298 = vld [vmem:[#allocation7 + $0x14] sm:$0xf]
    %v299 = vld [vmem:[#allocation7 + $0x18] sm:$0xf]
    %v300 = vld [vmem:[#allocation7 + $0x1c] sm:$0xf]
    %v301 = vld [vmem:[#allocation7 + $0x20] sm:$0xf]
    %v302 = vld [vmem:[#allocation7 + $0x24] sm:$0xf]
    %v303 = vld [vmem:[#allocation7 + $0x28] sm:$0xf]
    %v304 = vld [vmem:[#allocation7 + $0x2c] sm:$0xf]
    %v305 = vld [vmem:[#allocation7 + $0x30] sm:$0xf]
    %v306 = vld [vmem:[#allocation7 + $0x34] sm:$0xf]
    %v307 = vld [vmem:[#allocation7 + $0x38] sm:$0xf]
    %v308 = vld [vmem:[#allocation7 + $0x3c] sm:$0xf]
    %v309 = vld [vmem:[%s3] sm:$0x1]
    %v311 = vlaneseq
    %v312 = vshrl.u32 %v311, 7
    %v313 = vsub.s32 0, %v312
    %v314 = vrot.slane %v309, %v313
    %v332 = vunpack.c.l.b16 %v293
    %v333 = vunpack.c.l.b16 %v294
    %v334 = vunpack.c.l.b16 %v295
    %v335 = vunpack.c.l.b16 %v296
    %v336 = vunpack.c.l.b16 %v297
    %v337 = vunpack.c.l.b16 %v298
    %v338 = vunpack.c.l.b16 %v299
    %v339 = vunpack.c.l.b16 %v300
    %v340 = vunpack.c.l.b16 %v301
    %v341 = vunpack.c.l.b16 %v302
    %v342 = vunpack.c.l.b16 %v303
    %v343 = vunpack.c.l.b16 %v304
    %v344 = vunpack.c.l.b16 %v305
    %v345 = vunpack.c.l.b16 %v306
    %v346 = vunpack.c.l.b16 %v307
    %v347 = vunpack.c.l.b16 %v308
    %v348 = vpack.c.b16 %v333, %v332
    %v349 = vpack.c.b16 %v335, %v334
    %v350 = vpack.c.b16 %v337, %v336
    %v351 = vpack.c.b16 %v339, %v338
    %v352 = vpack.c.b16 %v341, %v340
    %v353 = vpack.c.b16 %v343, %v342
    %v354 = vpack.c.b16 %v345, %v344
    %v355 = vpack.c.b16 %v347, %v346
    %364 = vmatprep.subr.bf16.mxu0 0
    %365 = vmatpush1.bf16.msra.mxu0 %v355
    %366 = vmatprep.subr.bf16.mxu0 0
    %367 = vmatpush1.bf16.msra.mxu0 %v354
    %368 = vmatprep.subr.bf16.mxu0 0
    %369 = vmatpush1.bf16.msra.mxu0 %v353
    %370 = vmatprep.subr.bf16.mxu0 0
    %371 = vmatpush1.bf16.msra.mxu0 %v352
    %372 = vmatprep.subr.bf16.mxu0 0
    %373 = vmatpush1.bf16.msra.mxu0 %v351
    %374 = vmatprep.subr.bf16.mxu0 0
    %375 = vmatpush1.bf16.msra.mxu0 %v350
    %376 = vmatprep.subr.bf16.mxu0 0
    %377 = vmatpush1.bf16.msra.mxu0 %v349
    %378 = vmatprep.subr.bf16.mxu0 0
    %379 = vmatpush1.bf16.msra.mxu0 %v348
    %380 = vmatprep.subr.bf16.mxu0 0
    %381 = vmatpush2.bf16.msra.mxu0 0
    %382 = vmatprep.subr.bf16.mxu0 0
    %383 = vmatpush2.bf16.msra.mxu0 0
    %384 = vmatprep.subr.bf16.mxu0 0
    %385 = vmatpush2.bf16.msra.mxu0 0
    %386 = vmatprep.subr.bf16.mxu0 0
    %387 = vmatpush2.bf16.msra.mxu0 0
    %388 = vmatprep.subr.bf16.mxu0 0
    %389 = vmatpush2.bf16.msra.mxu0 0
    %390 = vmatprep.subr.bf16.mxu0 0
    %391 = vmatpush2.bf16.msra.mxu0 0
    %392 = vmatprep.subr.bf16.mxu0 0
    %393 = vmatpush2.bf16.msra.mxu0 0
    %394 = vmatprep.subr.bf16.mxu0 0
    %395 = vmatpush2.bf16.msra.mxu0 0
    %396 = vmatprep.mubr.bf16.mxu0 0
    %397 = vmatmul.mubr.bf16.gmra.mxu0 %v285
    %v398 = vpop.f32.mrf.mxu0
    %v399 = vadd.f32 %v314, %v398
    %v400 = vpop.f32.mrf.mxu0
    %v401 = vpop.f32.mrf.mxu0
    %v402 = vadd.f32 %v314, %v401
    %v403 = vpop.f32.mrf.mxu0
    %404 = vmatprep.mubr.bf16.mxu0 0
    %405 = vmatmul.mubr.bf16.gmra.mxu0 %v286
    %v406 = vpop.f32.mrf.mxu0
    %v407 = vadd.f32 %v314, %v406
    %v408 = vpop.f32.mrf.mxu0
    %v409 = vpop.f32.mrf.mxu0
    %v410 = vadd.f32 %v314, %v409
    %v411 = vpop.f32.mrf.mxu0
    %412 = vmatprep.mubr.bf16.mxu0 0
    %413 = vmatmul.mubr.bf16.gmra.mxu0 %v287
    %v414 = vpop.f32.mrf.mxu0
    %v415 = vadd.f32 %v314, %v414
    %v416 = vpop.f32.mrf.mxu0
    %v417 = vpop.f32.mrf.mxu0
    %v418 = vadd.f32 %v314, %v417
    %v419 = vpop.f32.mrf.mxu0
    %420 = vmatprep.mubr.bf16.mxu0 0
    %421 = vmatmul.mubr.bf16.gmra.mxu0 %v288
    %v422 = vpop.f32.mrf.mxu0
    %v423 = vadd.f32 %v314, %v422
    %v424 = vpop.f32.mrf.mxu0
    %v425 = vpop.f32.mrf.mxu0
    %v426 = vadd.f32 %v314, %v425
    %v427 = vpop.f32.mrf.mxu0
    %428 = vmatprep.mubr.bf16.mxu0 0
    %429 = vmatmul.mubr.bf16.gmra.mxu0 %v289
    %v430 = vpop.f32.mrf.mxu0
    %v431 = vadd.f32 %v314, %v430
    %v432 = vpop.f32.mrf.mxu0
    %v433 = vpop.f32.mrf.mxu0
    %v434 = vadd.f32 %v314, %v433
    %v435 = vpop.f32.mrf.mxu0
    %436 = vmatprep.mubr.bf16.mxu0 0
    %437 = vmatmul.mubr.bf16.gmra.mxu0 %v290
    %v438 = vpop.f32.mrf.mxu0
    %v439 = vadd.f32 %v314, %v438
    %v440 = vpop.f32.mrf.mxu0
    %v441 = vpop.f32.mrf.mxu0
    %v442 = vadd.f32 %v314, %v441
    %v443 = vpop.f32.mrf.mxu0
    %444 = vmatprep.mubr.bf16.mxu0 0
    %445 = vmatmul.mubr.bf16.gmra.mxu0 %v291
    %v446 = vpop.f32.mrf.mxu0
    %v447 = vadd.f32 %v314, %v446
    %v448 = vpop.f32.mrf.mxu0
    %v449 = vpop.f32.mrf.mxu0
    %v450 = vadd.f32 %v314, %v449
    %v451 = vpop.f32.mrf.mxu0
    %452 = vmatprep.mubr.bf16.mxu0 0
    %453 = vmatmul.mubr.bf16.gmra.mxu0 %v292
    %v454 = vpop.f32.mrf.mxu0
    %v455 = vadd.f32 %v314, %v454
    %v456 = vpop.f32.mrf.mxu0
    %v457 = vpop.f32.mrf.mxu0
    %v458 = vadd.f32 %v314, %v457
    %v459 = vpop.f32.mrf.mxu0
    %460 = vdwg.mxu0
    %vm461 = vcmp.gt.f32.partialorder %v399, 0.0
    %vm462 = vcmp.gt.f32.partialorder %v402, 0.0
    %vm463 = vcmp.gt.f32.partialorder %v407, 0.0
    %vm464 = vcmp.gt.f32.partialorder %v410, 0.0
    %vm465 = vcmp.gt.f32.partialorder %v415, 0.0
    %vm466 = vcmp.gt.f32.partialorder %v418, 0.0
    %vm467 = vcmp.gt.f32.partialorder %v423, 0.0
    %vm468 = vcmp.gt.f32.partialorder %v426, 0.0
    %vm469 = vcmp.gt.f32.partialorder %v431, 0.0
    %vm470 = vcmp.gt.f32.partialorder %v434, 0.0
    %vm471 = vcmp.gt.f32.partialorder %v439, 0.0
    %vm472 = vcmp.gt.f32.partialorder %v442, 0.0
    %vm473 = vcmp.gt.f32.partialorder %v447, 0.0
    %vm474 = vcmp.gt.f32.partialorder %v450, 0.0
    %vm475 = vcmp.gt.f32.partialorder %v455, 0.0
    %vm476 = vcmp.gt.f32.partialorder %v458, 0.0
    %v477 = vmul.f32 %v399, 0.01
    %v478 = vmul.f32 %v402, 0.01
    %v479 = vmul.f32 %v407, 0.01
    %v480 = vmul.f32 %v410, 0.01
    %v481 = vmul.f32 %v415, 0.01
    %v482 = vmul.f32 %v418, 0.01
    %v483 = vmul.f32 %v423, 0.01
    %v484 = vmul.f32 %v426, 0.01
    %v485 = vmul.f32 %v431, 0.01
    %v486 = vmul.f32 %v434, 0.01
    %v487 = vmul.f32 %v439, 0.01
    %v488 = vmul.f32 %v442, 0.01
    %v489 = vmul.f32 %v447, 0.01
    %v490 = vmul.f32 %v450, 0.01
    %v491 = vmul.f32 %v455, 0.01
    %v492 = vmul.f32 %v458, 0.01
    %v493 = vsel %vm461, %v399, %v477
    %v494 = vsel %vm462, %v402, %v478
    %v495 = vsel %vm463, %v407, %v479
    %v496 = vsel %vm464, %v410, %v480
    %v497 = vsel %vm465, %v415, %v481
    %v498 = vsel %vm466, %v418, %v482
    %v499 = vsel %vm467, %v423, %v483
    %v500 = vsel %vm468, %v426, %v484
    %v501 = vsel %vm469, %v431, %v485
    %v502 = vsel %vm470, %v434, %v486
    %v503 = vsel %vm471, %v439, %v487
    %v504 = vsel %vm472, %v442, %v488
    %v505 = vsel %vm473, %v447, %v489
    %v506 = vsel %vm474, %v450, %v490
    %v507 = vsel %vm475, %v455, %v491
    %v508 = vsel %vm476, %v458, %v492
    %v509 = vpack.c.bf16 %v494, %v493
    %v510 = vpack.c.bf16 %v496, %v495
    %v511 = vpack.c.bf16 %v498, %v497
    %v512 = vpack.c.bf16 %v500, %v499
    %v513 = vpack.c.bf16 %v502, %v501
    %v514 = vpack.c.bf16 %v504, %v503
    %v515 = vpack.c.bf16 %v506, %v505
    %v516 = vpack.c.bf16 %v508, %v507
    %v525 = vunpack.c.l.b16 %v509
    %v526 = vunpack.c.h.b16 %v509
    %v527 = vunpack.c.l.b16 %v510
    %v528 = vunpack.c.h.b16 %v510
    %v529 = vunpack.c.l.b16 %v511
    %v530 = vunpack.c.h.b16 %v511
    %v531 = vunpack.c.l.b16 %v512
    %v532 = vunpack.c.h.b16 %v512
    %v533 = vunpack.c.l.b16 %v513
    %v534 = vunpack.c.h.b16 %v513
    %v535 = vunpack.c.l.b16 %v514
    %v536 = vunpack.c.h.b16 %v514
    %v537 = vunpack.c.l.b16 %v515
    %v538 = vunpack.c.h.b16 %v515
    %v539 = vunpack.c.l.b16 %v516
    %v540 = vunpack.c.h.b16 %v516
    %v541 = vpack.c.b16 %v525, %v525
    %v542 = vpack.c.b16 %v526, %v526
    %v543 = vpack.c.b16 %v527, %v527
    %v544 = vpack.c.b16 %v528, %v528
    %v545 = vpack.c.b16 %v529, %v529
    %v546 = vpack.c.b16 %v530, %v530
    %v547 = vpack.c.b16 %v531, %v531
    %v548 = vpack.c.b16 %v532, %v532
    %v549 = vpack.c.b16 %v533, %v533
    %v550 = vpack.c.b16 %v534, %v534
    %v551 = vpack.c.b16 %v535, %v535
    %v552 = vpack.c.b16 %v536, %v536
    %v553 = vpack.c.b16 %v537, %v537
    %v554 = vpack.c.b16 %v538, %v538
    %v555 = vpack.c.b16 %v539, %v539
    %v556 = vpack.c.b16 %v540, %v540
    %573 = vst [vmem:[#allocation8] sm:$0xf] %v541
    %574 = vst [vmem:[#allocation8 + $0x4] sm:$0xf] %v542
    %575 = vst [vmem:[#allocation8 + $0x8] sm:$0xf] %v543
    %576 = vst [vmem:[#allocation8 + $0xc] sm:$0xf] %v544
    %577 = vst [vmem:[#allocation8 + $0x10] sm:$0xf] %v545
    %578 = vst [vmem:[#allocation8 + $0x14] sm:$0xf] %v546
    %579 = vst [vmem:[#allocation8 + $0x18] sm:$0xf] %v547
    %580 = vst [vmem:[#allocation8 + $0x1c] sm:$0xf] %v548
    %581 = vst [vmem:[#allocation8 + $0x20] sm:$0xf] %v549
    %582 = vst [vmem:[#allocation8 + $0x24] sm:$0xf] %v550
    %583 = vst [vmem:[#allocation8 + $0x28] sm:$0xf] %v551
    %584 = vst [vmem:[#allocation8 + $0x2c] sm:$0xf] %v552
    %585 = vst [vmem:[#allocation8 + $0x30] sm:$0xf] %v553
    %586 = vst [vmem:[#allocation8 + $0x34] sm:$0xf] %v554
    %587 = vst [vmem:[#allocation8 + $0x38] sm:$0xf] %v555
    %588 = vst [vmem:[#allocation8 + $0x3c] sm:$0xf] %v556
    // Predicated region
    $region30: #{tpu_custom_call.1} parent=1 // pred_check
      _
    $region31: #{tpu_custom_call.1} parent=1 // pred_check_branch
      %590 = sbr.rel (0) target = $region33
    $region32: #{tpu_custom_call.1} parent=1 // pred_region
      %s592 = ssub.s32 1024, 1024
      %593 = vsyncadd [#allocation4], %s592
      %s594 = sshll.u32 [#allocation8], 4
      %s595 = int_to_ptr.vmem [resolvable:$true] %s594
      %600 = dma.vmem_to_hbm [thread:$0]  %s595, 1024, %s4, [#allocation4], 64, 64, 4
    $region33: #{tpu_custom_call.1} parent=1 // pred_fallthru
      _
    // Predicated region
    $region34: #{tpu_custom_call.1} parent=1 // pred_check
      _
    $region35: #{tpu_custom_call.1} parent=1 // pred_check_branch
      %602 = sbr.rel (0) target = $region37
    $region36: #{tpu_custom_call.1} parent=1 // pred_region
      %603 = dma.done [#allocation4], 1024
    $region37: #{tpu_custom_call.1} parent=1 // pred_fallthru
      _
    %604 = vsyncpa [#allocation3], 1
    %605 = vsyncpa [#allocation6], 1
    %606 = vsyncpa [#allocation4], 1

</llo_original>
